<compile_context>
chip_gen: v6e
topology: v6e:2x2x1
jax: 0.10.0
libtpu: 0.0.40
codegen_flags: <defaults>
</compile_context>

<pallas_src>
import numpy as np
import jax
import jax.numpy as jnp
from jax.experimental import pallas as pl
from jax.experimental.pallas import tpu as pltpu


def _round_up(x, m):
    return (x + m - 1) // m * m


# ----------------------------- Pallas kernel ---------------------------------
def _planar_pos_embed_kernel(pos_ref, coeff_ref, o_ref):
    # pos_ref:   (tm, 2)  per-token (row, col) planar offsets.
    # coeff_ref: (8, D)   row 0 = inv_row, row 1 = inv_col, row 2 = phase (rows 3..7 pad).
    # o_ref:     (tm, D)  lane-dense output tile.
    pos = pos_ref[...]
    row = pos[:, 0:1]                 # (tm, 1)
    col = pos[:, 1:2]                 # (tm, 1)
    inv_row = coeff_ref[0:1, :]       # (1, D)
    inv_col = coeff_ref[1:2, :]       # (1, D)
    phase = coeff_ref[2:3, :]         # (1, D)
    theta = row * inv_row + col * inv_col + phase
    o_ref[...] = jnp.sin(theta).astype(o_ref.dtype)


# --------------------------- wrapper / glue -----------------------------------
def _coefficient_table(embedding_dim, min_scale, scale_step):
    """(8, D) table: row 0 = inv_row, row 1 = inv_col, row 2 = phase.

    Implements the interleaved sin/cos layout of the module; padded to 8
    sublanes so the BlockSpec tile is a full (8, 128)-aligned VMEM tile.
    """
    num_scales = embedding_dim // 4
    s = np.arange(num_scales, dtype=np.float64)
    scale = float(min_scale) * np.power(float(scale_step), s) / (2.0 * np.pi)
    inv_scale = (1.0 / scale).astype(np.float32)              # (num_scales,)

    table = np.zeros((8, embedding_dim), np.float32)
    table[0, 0::4] = inv_scale        # lane 4s+0: sin(row / scale_s)
    table[0, 1::4] = inv_scale        # lane 4s+1: cos(row / scale_s) = sin(. + pi/2)
    table[1, 2::4] = inv_scale        # lane 4s+2: sin(col / scale_s)
    table[1, 3::4] = inv_scale        # lane 4s+3: cos(col / scale_s)
    half_pi = np.float32(np.pi / 2.0)
    table[2, 1::4] = half_pi
    table[2, 3::4] = half_pi
    return jnp.asarray(table)


def _choose_row_tile(M, block_rows, min_grid_steps=4):
    """Row tile: as large as block_rows, multiple of 8, but keep >= min_grid_steps
    grid steps so v7x's two TensorCores both get work on the 'parallel' axis."""
    tm = min(int(block_rows), _round_up(M, 8))
    if M > 8 * min_grid_steps:
        tm = min(tm, _round_up(pl.cdiv(M, min_grid_steps), 8))
    return max(8, _round_up(tm, 8))


def relative_positions_from_patch_grid(batch_size, image_hw, patch_size):
    """Mirror of the module's `patch_size is not None` branch: per-patch-center
    pixel offsets from the image center, row-major over the patch grid."""
    H, W = int(image_hw[0]), int(image_hw[1])
    ph, pw = int(patch_size[0]), int(patch_size[1])
    nr, nc = H // ph, W // pw
    row_off = (ph // 2 + np.arange(nr) * ph - H // 2).astype(np.float32)
    col_off = (pw // 2 + np.arange(nc) * pw - W // 2).astype(np.float32)
    rel = np.zeros((nr, nc, 2), np.float32)
    rel[:, :, 0] = row_off[:, None]
    rel[:, :, 1] = col_off[None, :]
    rel = np.broadcast_to(rel[None], (batch_size, nr, nc, 2))
    return jnp.asarray(rel.reshape(batch_size, nr * nc, 2))


def planar_position_embedding(relative_positions, *, embedding_dim, min_scale,
                              scale_step, block_rows=1024, out_dtype=jnp.float32):
    """relative_positions: (B, N, 2) -> (B, N, embedding_dim)."""
    assert embedding_dim % 4 == 0
    B, N, two = relative_positions.shape
    assert two == 2
    D = int(embedding_dim)
    # TODO(synk): for D < 128 the output becomes lane-sparse (masked stores);
    # fold tokens into the lane axis in that configuration instead.

    coeff = _coefficient_table(D, min_scale, scale_step)          # (8, D), VMEM-resident

    M = B * N
    pos = relative_positions.reshape(M, 2).astype(jnp.float32)    # single (M, 2) input
    tm = _choose_row_tile(M, block_rows)
    grid = (pl.cdiv(M, tm),)   # partial last block handled by Pallas: no pad, no out[:M]

    out = pl.pallas_call(
        _planar_pos_embed_kernel,
        out_shape=jax.ShapeDtypeStruct((M, D), out_dtype),
        grid=grid,
        in_specs=[
            pl.BlockSpec((tm, 2), lambda i: (i, 0)),   # (row, col) offsets, row-tiled
            pl.BlockSpec((8, D), lambda i: (0, 0)),    # fused coefficient table (constant)
        ],
        out_specs=pl.BlockSpec((tm, D), lambda i: (i, 0)),
        compiler_params=pltpu.CompilerParams(
            dimension_semantics=("parallel",)),        # v7x: 2 TCs split the row grid
    )(pos, coeff)

    return out.reshape(B, N, D)


# ------------------------------ reference -------------------------------------
def _reference(relative_positions, embedding_dim, min_scale, scale_step):
    rel = np.asarray(relative_positions, np.float64)
    B, N, _ = rel.shape
    out = np.zeros((B, N, embedding_dim), np.float32)
    for s in range(embedding_dim // 4):
        scale = min_scale * scale_step ** s / (2.0 * np.pi)
        out[..., 4 * s + 0] = np.sin(rel[..., 0] / scale)
        out[..., 4 * s + 1] = np.cos(rel[..., 0] / scale)
        out[..., 4 * s + 2] = np.sin(rel[..., 1] / scale)
        out[..., 4 * s + 3] = np.cos(rel[..., 1] / scale)
    return out


# --------------------------------- main ----------------------------------------
if __name__ == "__main__":
    key = jax.random.PRNGKey(0)
    k_img, k_rel = jax.random.split(key)

    EMBED_DIM = 128        # % 4 == 0; multiple of 128 -> lane-dense output tiles
    MIN_SCALE = 4.0
    SCALE_STEP = 1.3

    # ---- Case 1: module's `patch_size is not None` path (shape-only index math) ----
    B, C, H, W = 2, 3, 32, 32
    PATCH = (4, 4)
    image = jax.random.uniform(k_img, (B, C, H, W), dtype=jnp.float32)  # contents unused
    rel_grid = relative_positions_from_patch_grid(B, image.shape[2:], PATCH)  # (2, 64, 2)

    out1 = planar_position_embedding(rel_grid, embedding_dim=EMBED_DIM,
                                     min_scale=MIN_SCALE, scale_step=SCALE_STEP)
    out1 = jax.block_until_ready(out1)
    num_tokens = (H // PATCH[0]) * (W // PATCH[1])
    assert out1.shape == (B, num_tokens, EMBED_DIM), out1.shape
    ref1 = _reference(rel_grid, EMBED_DIM, MIN_SCALE, SCALE_STEP)
    np.testing.assert_allclose(np.asarray(out1), ref1, atol=2e-3, rtol=0.0)

    # ---- Case 2: explicit relative_positions; token count not a tile multiple ----
    N2 = 37
    rel2 = (jax.random.uniform(k_rel, (B, N2, 2), dtype=jnp.float32) - 0.5) * 40.0
    out2 = planar_position_embedding(rel2, embedding_dim=EMBED_DIM,
                                     min_scale=MIN_SCALE, scale_step=SCALE_STEP)
    out2 = jax.block_until_ready(out2)
    assert out2.shape == (B, N2, EMBED_DIM), out2.shape
    ref2 = _reference(rel2, EMBED_DIM, MIN_SCALE, SCALE_STEP)
    np.testing.assert_allclose(np.asarray(out2), ref2, atol=2e-3, rtol=0.0)

    print("KERNEL_OK")
</pallas_src>

<mosaic_0001>
module attributes {stable_mosaic.version = 11 : i64} {
  func.func @_planar_pos_embed_kernel(%arg0: i32, %arg1: memref<32x2xf32, #tpu.memory_space<vmem>>, %arg2: memref<8x128xf32, #tpu.memory_space<vmem>>, %arg3: memref<32x128xf32, #tpu.memory_space<vmem>>) attributes {dimension_semantics = [#tpu.dimension_semantics<parallel>], iteration_bounds = array<i64: 4>, scalar_prefetch = 0 : i64, scratch_operands = 0 : i64, tpu.core_type = #tpu.core_type<tc>, window_params = [{transform_indices = @transform_0, window_bounds = array<i64: 32, 2>}, {pipeline_mode = #tpu.pipeline_mode<synchronous>, transform_indices = @transform_1, window_bounds = array<i64: 8, 128>}, {transform_indices = @transform_2, window_bounds = array<i64: 32, 128>}]} {
    %c0 = arith.constant 0 : index
    %c0_0 = arith.constant 0 : index
    %0 = vector.load %arg1[%c0, %c0_0] : memref<32x2xf32, #tpu.memory_space<vmem>>, vector<32x2xf32>
    %1 = vector.extract_strided_slice %0 {offsets = [0, 0], sizes = [32, 1], strides = [1, 1]} : vector<32x2xf32> to vector<32x1xf32>
    %2 = vector.extract_strided_slice %0 {offsets = [0, 1], sizes = [32, 1], strides = [1, 1]} : vector<32x2xf32> to vector<32x1xf32>
    %c0_1 = arith.constant 0 : index
    %c0_2 = arith.constant 0 : index
    %3 = vector.load %arg2[%c0_1, %c0_2] : memref<8x128xf32, #tpu.memory_space<vmem>>, vector<1x128xf32>
    %c1 = arith.constant 1 : index
    %c0_3 = arith.constant 0 : index
    %4 = vector.load %arg2[%c1, %c0_3] : memref<8x128xf32, #tpu.memory_space<vmem>>, vector<1x128xf32>
    %c2 = arith.constant 2 : index
    %c0_4 = arith.constant 0 : index
    %5 = vector.load %arg2[%c2, %c0_4] : memref<8x128xf32, #tpu.memory_space<vmem>>, vector<1x128xf32>
    %6 = vector.broadcast %1 : vector<32x1xf32> to vector<32x128xf32>
    %7 = vector.broadcast %3 : vector<1x128xf32> to vector<32x128xf32>
    %8 = arith.mulf %6, %7 : vector<32x128xf32>
    %9 = vector.broadcast %2 : vector<32x1xf32> to vector<32x128xf32>
    %10 = vector.broadcast %4 : vector<1x128xf32> to vector<32x128xf32>
    %11 = arith.mulf %9, %10 : vector<32x128xf32>
    %12 = arith.addf %8, %11 : vector<32x128xf32>
    %13 = vector.broadcast %5 : vector<1x128xf32> to vector<32x128xf32>
    %14 = arith.addf %12, %13 : vector<32x128xf32>
    %15 = math.sin %14 : vector<32x128xf32>
    %c0_5 = arith.constant 0 : index
    %c0_6 = arith.constant 0 : index
    %16 = vector.load %arg3[%c0_5, %c0_6] : memref<32x128xf32, #tpu.memory_space<vmem>>, vector<32x128xf32>
    tpu.vector_store %arg3[%c0_5, %c0_6], %15 {strides = array<i32>} : memref<32x128xf32, #tpu.memory_space<vmem>>, vector<32x128xf32>,
    return
  }
  func.func @transform_0(%arg0: i32) -> (i32, i32) {
    %c0_i32 = arith.constant 0 : i32
    %c0_i32_0 = arith.constant 0 : i32
    return %arg0, %c0_i32 : i32, i32
  }
  func.func @transform_1(%arg0: i32) -> (i32, i32) {
    %c0_i32 = arith.constant 0 : i32
    %c0_i32_0 = arith.constant 0 : i32
    %c0_i32_1 = arith.constant 0 : i32
    return %c0_i32, %c0_i32_0 : i32, i32
  }
  func.func @transform_2(%arg0: i32) -> (i32, i32) {
    %c0_i32 = arith.constant 0 : i32
    %c0_i32_0 = arith.constant 0 : i32
    return %arg0, %c0_i32 : i32, i32
  }
}

</mosaic_0001>

<llo_original>
// kernel: tpu_custom_call.1
$region0: #{tpu_custom_call.1}
  #allocation0 [shape = 'u32[]', space=smem, size = 0x4, offset = 0x4, fixed_abs, tag = 'smem constant byte address 0x4 - core index']
  #allocation1 [shape = 'u32[144,128]{1,0:T(1,128)}', space=vmem, size = 0x12000, scoped, tag = 'internal scratch']
  %s0 = inlined_call_operand.vmem [shape: f32[128,2], index: 0, kind: input, shape index: {}]
  %s1 = inlined_call_operand.vmem [shape: f32[8,128], index: 1, kind: input, shape index: {}]
  %s2 = inlined_call_operand.hbm [shape: f32[128,128], index: 2, kind: output, shape index: {}]
  %s3 = sld [smem:[#allocation0]]
  $region41: #{tpu_custom_call.1} parent=0
    _
  %s5 = ssub.s32 1, %s3
  %s6 = scalar_select 0, %s5, %s3
  $region1: #{tpu_custom_call.1} parent=0
    #allocation2 [shape = 'u8[32768]{0}', space=vmem, size = 0x8000, scoped, tag = 'output window, operand 0']
    #allocation3 [shape = 's32[2]{0}', space=sflag, size = 0x8, scoped, tag = 'scoped memory for tpu_custom_call.1']
    %7 = vsyncpa [#allocation3], 0
    %s8 = scalar_lea.sflag [#allocation3], 1
    %9 = vsyncpa %s8, 0
    loop: start=0, step=1, limit=6
    $region2: #{tpu_custom_call.1} parent=1 // loop_pre_header
      _
    $region3: #{tpu_custom_call.1} parent=1 // loop_header
      %s11 = sphi 0, %s15
      %p12 = scmp.ge.s32.totalorder %s11, 6
      %s21 = sphi 0, %s23
      %s24 = sphi 0, %s21
      %s25 = sphi 0, %s24
      %s41 = sphi 0, %s25
      %s45 = sphi 0, %s45
      %s47 = sphi 0, %s45
      %s48 = sphi 0, %s47
      %s62 = sphi 0, %s48
      %s68 = sphi 0, %s70
      %s71 = sphi 0, %s68
      %s72 = sphi 0, %s71
      %s88 = sphi 0, %s72
    $region4: #{tpu_custom_call.1} parent=1 // loop_header_branch
      %14 = sbr.rel (%p12) target = $region8
    $region5: #{tpu_custom_call.1} parent=1 // loop_body
      %s16 = ssub.s32 %s11, 1
      %s17 = ssub.s32 %s11, 2
      %s18 = sadd.s32 %s11, 1
      %s19 = ssub.s32 %s11, %s18
      %p20 = scmp.eq.s32.totalorder %s19, 0
      %s22 = sadd.s32 %s21, 1
      %s23 = scalar_select %p20, %s21, %s22
      %p26 = pneg %p20
      %p27 = scmp.eq.s32.totalorder %s11, 3
      %p28 = por %p26, %p27
      %p29 = scmp.ne.s32.totalorder %s21, %s24
      %p30 = scmp.eq.s32.totalorder %s11, 0
      %p31 = por %p29, %p30
      %p32 = scmp.ne.s32.totalorder %s21, %s24
      %p33 = scmp.eq.s32.totalorder %s16, 3
      %p34 = por %p32, %p33
      %p35 = scmp.ne.s32.totalorder %s24, %s25
      %p36 = scmp.eq.s32.totalorder %s16, 0
      %p37 = por %p35, %p36
      %p38 = scmp.ne.s32.totalorder %s24, %s25
      %p39 = scmp.eq.s32.totalorder %s17, 3
      %p40 = por %p38, %p39
      %p42 = scmp.ne.s32.totalorder %s25, %s41
      %p43 = scmp.eq.s32.totalorder %s17, 0
      %p44 = por %p42, %p43
      %s46 = sadd.s32 %s45, 1
      %p49 = scmp.eq.s32.totalorder %s11, 3
      %p50 = scmp.ne.s32.totalorder %s45, %s47
      %p51 = scmp.eq.s32.totalorder %s11, 0
      %p52 = por %p50, %p51
      %p53 = scmp.ne.s32.totalorder %s45, %s47
      %p54 = scmp.eq.s32.totalorder %s16, 3
      %p55 = por %p53, %p54
      %p56 = scmp.ne.s32.totalorder %s47, %s48
      %p57 = scmp.eq.s32.totalorder %s16, 0
      %p58 = por %p56, %p57
      %p59 = scmp.ne.s32.totalorder %s47, %s48
      %p60 = scmp.eq.s32.totalorder %s17, 3
      %p61 = por %p59, %p60
      %p63 = scmp.ne.s32.totalorder %s48, %s62
      %p64 = scmp.eq.s32.totalorder %s17, 0
      %p65 = por %p63, %p64
      %s66 = ssub.s32 %s11, %s18
      %p67 = scmp.eq.s32.totalorder %s66, 0
      %s69 = sadd.s32 %s68, 1
      %s70 = scalar_select %p67, %s68, %s69
      %p73 = pneg %p67
      %p74 = scmp.eq.s32.totalorder %s11, 3
      %p75 = por %p73, %p74
      %p76 = scmp.ne.s32.totalorder %s68, %s71
      %p77 = scmp.eq.s32.totalorder %s11, 0
      %p78 = por %p76, %p77
      %p79 = scmp.ne.s32.totalorder %s68, %s71
      %p80 = scmp.eq.s32.totalorder %s16, 3
      %p81 = por %p79, %p80
      %p82 = scmp.ne.s32.totalorder %s71, %s72
      %p83 = scmp.eq.s32.totalorder %s16, 0
      %p84 = por %p82, %p83
      %p85 = scmp.ne.s32.totalorder %s71, %s72
      %p86 = scmp.eq.s32.totalorder %s17, 3
      %p87 = por %p85, %p86
      %p89 = scmp.ne.s32.totalorder %s72, %s88
      %p90 = scmp.eq.s32.totalorder %s17, 0
      %p91 = por %p89, %p90
      %p92 = scmp.le.s32.totalorder 1, %s11
      %p93 = scmp.lt.s32.totalorder %s11, 5
      %p94 = pnand %p92, %p93
      %p95 = pneg %p94
      // Predicated region
      $region9: #{tpu_custom_call.1} parent=5 // pred_check
        _
      $region10: #{tpu_custom_call.1} parent=5 // pred_check_branch
        %97 = sbr.rel (%p94) target = $region12
      $region11: #{tpu_custom_call.1} parent=5 // pred_region
        %s98 = ssub.s32 %s11, 1
        // Predicated region
        $region13: #{tpu_custom_call.1} parent=11 // pred_check
          %p99 = pneg %p58
        $region14: #{tpu_custom_call.1} parent=11 // pred_check_branch
          %101 = sbr.rel (%p99) target = $region16
        $region15: #{tpu_custom_call.1} parent=11 // pred_region
          _
        $region16: #{tpu_custom_call.1} parent=11 // pred_fallthru
          _
      $region12: #{tpu_custom_call.1} parent=5 // pred_fallthru
        _
      %p102 = scmp.lt.s32.totalorder %s11, 4
      // Predicated region
      $region17: #{tpu_custom_call.1} parent=5 // pred_check
        %p103 = pneg %p102
      $region18: #{tpu_custom_call.1} parent=5 // pred_check_branch
        %105 = sbr.rel (%p103) target = $region20
      $region19: #{tpu_custom_call.1} parent=5 // pred_region
        // Predicated region
        $region21: #{tpu_custom_call.1} parent=19 // pred_check
          %p106 = pneg %p31
        $region22: #{tpu_custom_call.1} parent=19 // pred_check_branch
          %108 = sbr.rel (%p106) target = $region24
        $region23: #{tpu_custom_call.1} parent=19 // pred_region
          %s109 = smul.u32 4, %s11
          %p110 = scmp.lt.s32.totalorder %s109, 15
          %s111 = scalar_select %p110, %s109, 15
          %s112 = smul.addr %s111, 8
          %s113 = scalar_lea.vmem %s0, %s112
          %s114 = smul.u32 4, %s11
        $region24: #{tpu_custom_call.1} parent=19 // pred_fallthru
          _
      $region20: #{tpu_custom_call.1} parent=5 // pred_fallthru
        _
      %p115 = scmp.le.s32.totalorder 1, %s11
      %p116 = scmp.lt.s32.totalorder %s11, 5
      %p117 = pnand %p115, %p116
      %p118 = pneg %p117
      // Predicated region
      $region25: #{tpu_custom_call.1} parent=5 // pred_check
        _
      $region26: #{tpu_custom_call.1} parent=5 // pred_check_branch
        %120 = sbr.rel (%p117) target = $region28
      $region27: #{tpu_custom_call.1} parent=5 // pred_region
        %s121 = ssub.s32 %s11, 1
        %s122 = smul.u32 4, %s16
        %p123 = scmp.lt.s32.totalorder %s122, 15
        %s124 = scalar_select %p123, %s122, 15
        %s125 = smul.addr %s124, 8
        %s126 = scalar_lea.vmem %s0, %s125
        %p127 = pneg %p37
        %p128 = pneg %p34
        %p129 = pneg %p58
        %p130 = pneg %p55
        %p131 = pneg %p84
        %p132 = pneg %p81
        %s133 = sand.u32 %s71, 1
        %s134 = scalar_lea.sflag [#allocation3], %s133
        %s135 = sand.u32 %s71, 1
        %s136 = smul.addr %s135, 32
        %s137 = scalar_lea.vmem [#allocation2], %s136
        %s138 = smul.u32 4, %s16
        %p139 = scmp.lt.s32.totalorder %s138, 15
        %s140 = scalar_select %p139, %s138, 15
        %s141 = smul.addr %s140, 8
        %s142 = scalar_lea.vmem %s0, %s141
        %s143 = smul.u32 4, %s16
        %s144 = smul.u32 4, %s16
        %v145 = vld [vmem:[%s142] sm:$0xff]
        %v146 = vld [vmem:[%s142 + $0x8] sm:$0xff]
        %v147 = vld [vmem:[%s142 + $0x10] sm:$0xff]
        %v148 = vld [vmem:[%s142 + $0x18] sm:$0xff]
        %v149 = vld [vmem:[%s1] sm:$0x1]
        %v150 = vld [vmem:[%s1 + $0x1] sm:$0x1]
        %v151 = vld [vmem:[%s1 + $0x2] sm:$0x1]
        %153 = vset.pattern.permute.xlu0 0
        %154 = vperm.xlu0 %153, %v145
        %v155 = vpop.permute.xlu0 %154
        %158 = vset.pattern.permute.xlu0 0
        %159 = vperm.xlu0 %158, %v146
        %v160 = vpop.permute.xlu0 %159
        %163 = vset.pattern.permute.xlu0 0
        %164 = vperm.xlu0 %163, %v147
        %v165 = vpop.permute.xlu0 %164
        %168 = vset.pattern.permute.xlu0 0
        %169 = vperm.xlu0 %168, %v148
        %v170 = vpop.permute.xlu0 %169
        %v172 = vlaneseq
        %v173 = vshrl.u32 %v172, 7
        %v174 = vsub.s32 0, %v173
        %v175 = vrot.slane %v149, %v174
        %v176 = vmul.f32 %v155, %v175
        %v177 = vmul.f32 %v160, %v175
        %v178 = vmul.f32 %v165, %v175
        %v179 = vmul.f32 %v170, %v175
        %180 = vset.pattern.permute.xlu0 1
        %181 = vperm.xlu0 %180, %v145
        %v182 = vpop.permute.xlu0 %181
        %184 = vset.pattern.permute.xlu0 1
        %185 = vperm.xlu0 %184, %v146
        %v186 = vpop.permute.xlu0 %185
        %188 = vset.pattern.permute.xlu0 1
        %189 = vperm.xlu0 %188, %v147
        %v190 = vpop.permute.xlu0 %189
        %192 = vset.pattern.permute.xlu0 1
        %193 = vperm.xlu0 %192, %v148
        %v194 = vpop.permute.xlu0 %193
        %v196 = vlaneseq
        %v197 = vshrl.u32 %v196, 7
        %v198 = vsub.s32 0, %v197
        %v199 = vrot.slane %v150, %v198
        %v200 = vmul.f32 %v182, %v199
        %v201 = vmul.f32 %v186, %v199
        %v202 = vmul.f32 %v190, %v199
        %v203 = vmul.f32 %v194, %v199
        %v204 = vadd.f32 %v176, %v200
        %v205 = vadd.f32 %v177, %v201
        %v206 = vadd.f32 %v178, %v202
        %v207 = vadd.f32 %v179, %v203
        %v208 = vlaneseq
        %v209 = vshrl.u32 %v208, 7
        %v210 = vsub.s32 0, %v209
        %v211 = vrot.slane %v151, %v210
        %v212 = vadd.f32 %v204, %v211
        %v213 = vadd.f32 %v205, %v211
        %v214 = vadd.f32 %v206, %v211
        %v215 = vadd.f32 %v207, %v211
        %v216 = vand.u32 2147483647, %v212
        %vm217 = vcmp.le.f32.partialorder %v216, 0.7853982
        %vm218 = vcmp.lt.s32.totalorder %v212, 0
        %v219 = vand.u32 %v212, 2139095040
        %v220 = vshrl.u32 %v219, 23
        %v221 = vsub.s32 %v220, 127
        %v222 = vand.u32 2147483647, %v212
        %v223 = vand.u32 %v222, 8388607
        %v224 = vor.u32 %v223, 8388608
        %v225 = vsub.s32 0, %v224
        %v226 = vadd.s32 %v221, 1
        %vm227 = vcmp.gt.s32.totalorder %v226, 0
        %v228 = vsel %vm227, %v226, 0
        %v229 = vshrl.u32 %v228, 5
        %v230 = vand.u32 %v228, 31
        %v231 = vsub.s32 32, %v230
        %v232 = vshrl.u32 683565275, %v231
        %v233 = vshll.u32 683565275, %v230
        %v234 = vshrl.u32 2475754826, %v231
        %v235 = vor.u32 %v233, %v234
        %v236 = vshll.u32 2475754826, %v230
        %v237 = vshrl.u32 2131351028, %v231
        %v238 = vor.u32 %v236, %v237
        %v239 = vshll.u32 2131351028, %v230
        %v240 = vshrl.u32 2102212464, %v231
        %v241 = vor.u32 %v239, %v240
        %v242 = vshll.u32 2102212464, %v230
        %v243 = vshrl.u32 920167782, %v231
        %v244 = vor.u32 %v242, %v243
        %v245 = vshll.u32 920167782, %v230
        %v246 = vshrl.u32 1326507024, %v231
        %v247 = vor.u32 %v245, %v246
        %vm248 = vcmp.lt.s32.totalorder %v229, 1
        %vm249 = vcmp.lt.s32.totalorder %v229, 2
        %vm250 = vcmp.lt.s32.totalorder %v229, 3
        %vm251 = vcmp.lt.s32.totalorder %v229, 4
        %v252 = vsel %vm248, %v232, %v235
        %v253 = vsel %vm251, %v241, 2102212464
        %v254 = vsel %vm250, %v238, %v253
        %v255 = vsel %vm249, %v252, %v254
        %v256 = vsel %vm248, %v235, %v238
        %v257 = vsel %vm251, %v244, 920167782
        %v258 = vsel %vm250, %v241, %v257
        %v259 = vsel %vm249, %v256, %v258
        %v260 = vsel %vm248, %v238, %v241
        %v261 = vsel %vm251, %v247, 1326507024
        %v262 = vsel %vm250, %v244, %v261
        %v263 = vsel %vm249, %v260, %v262
        %v264 = vshll.u32 %v224, 8
        %v265 = vmul.u32.u64.compose %v264, %v263
        %v266 = vextract.low.u32 %v265
        %v267 = vextract.high.u32 %v265
        %v268 = vmul.u32.u64.compose %v264, %v259
        %v269 = vextract.low.u32 %v268
        %v270 = vextract.high.u32 %v268
        %v271 = vmul.u32 %v264, %v255
        %v272 = vadd.s32 %v267, %v269
        %vm273 = vc.u32 %v267, %v269
        %v274 = vadd.s32 %v270, 1
        %v275 = vsel %vm273, %v274, %v270
        %v276 = vadd.s32 %v271, %v275
        %v277 = vadd.s32 %v276, 536870912
        %v278 = vshrl.u32 %v277, 30
        %v279 = vshll.u32 %v278, 30
        %v280 = vsub.s32 %v276, %v279
        %vm281 = vcmp.lt.s32.totalorder %v280, 0
        %v282 = vsub.s32 0, %v280
        %v283 = vsel %vm281, %v282, %v280
        %v284 = vclz %v283
        %v285 = vsub.s32 %v284, 2
        %vm286 = vcmp.gt.s32.totalorder 0, %v285
        %v287 = vsel %vm286, 0, %v285
        %v288 = vsub.s32 32, %v287
        %v289 = vshll.u32 %v280, %v287
        %v290 = vshrl.u32 %v272, %v288
        %v291 = vor.u32 %v289, %v290
        %v292 = vsub.s32 4294967266, %v287
        %v293 = vadd.s32 %v292, 127
        %v294 = vshll.u32 %v293, 23
        %v295 = vor.u32 4788187, %v294
        %v296 = vand.u32 2147483647, %v295
        %v298 = vcvt.s32.f32 %v291
        %v299 = vmul.f32 %v298, %v296
        %v300 = vxor.u32 %v299, 2147483648
        %v301 = vsel %vm218, %v300, %v299
        %v302 = vsub.s32 4, %v278
        %v303 = vsel %vm218, %v302, %v278
        %v304 = vsel %vm217, %v212, %v301
        %v305 = vsel %vm217, 0, %v303
        %v306 = vcosq.f32.pop %v304
        %v307 = vsinq.f32.pop %v304
        %vm308 = vweird.f32 %v212
        %v309 = vadd.s32 %v305, 3
        %v310 = vand.u32 %v309, 3
        %vm311 = vcmp.lt.s32.totalorder %v310, 2
        %vm312 = vcmp.eq.s32.totalorder %v310, 0
        %v313 = vxor.u32 %v307, 2147483648
        %v314 = vsel %vm312, %v306, %v313
        %vm315 = vcmp.eq.s32.totalorder %v310, 2
        %v316 = vxor.u32 %v306, 2147483648
        %v317 = vsel %vm315, %v316, %v307
        %v318 = vsel %vm311, %v314, %v317
        %v319 = vsel %vm308, nan, %v318
        %v320 = vand.u32 2147483647, %v213
        %vm321 = vcmp.le.f32.partialorder %v320, 0.7853982
        %vm322 = vcmp.lt.s32.totalorder %v213, 0
        %v323 = vand.u32 %v213, 2139095040
        %v324 = vshrl.u32 %v323, 23
        %v325 = vsub.s32 %v324, 127
        %v326 = vand.u32 2147483647, %v213
        %v327 = vand.u32 %v326, 8388607
        %v328 = vor.u32 %v327, 8388608
        %v329 = vsub.s32 0, %v328
        %v330 = vadd.s32 %v325, 1
        %vm331 = vcmp.gt.s32.totalorder %v330, 0
        %v332 = vsel %vm331, %v330, 0
        %v333 = vshrl.u32 %v332, 5
        %v334 = vand.u32 %v332, 31
        %v335 = vsub.s32 32, %v334
        %v336 = vshrl.u32 683565275, %v335
        %v337 = vshll.u32 683565275, %v334
        %v338 = vshrl.u32 2475754826, %v335
        %v339 = vor.u32 %v337, %v338
        %v340 = vshll.u32 2475754826, %v334
        %v341 = vshrl.u32 2131351028, %v335
        %v342 = vor.u32 %v340, %v341
        %v343 = vshll.u32 2131351028, %v334
        %v344 = vshrl.u32 2102212464, %v335
        %v345 = vor.u32 %v343, %v344
        %v346 = vshll.u32 2102212464, %v334
        %v347 = vshrl.u32 920167782, %v335
        %v348 = vor.u32 %v346, %v347
        %v349 = vshll.u32 920167782, %v334
        %v350 = vshrl.u32 1326507024, %v335
        %v351 = vor.u32 %v349, %v350
        %vm352 = vcmp.lt.s32.totalorder %v333, 1
        %vm353 = vcmp.lt.s32.totalorder %v333, 2
        %vm354 = vcmp.lt.s32.totalorder %v333, 3
        %vm355 = vcmp.lt.s32.totalorder %v333, 4
        %v356 = vsel %vm352, %v336, %v339
        %v357 = vsel %vm355, %v345, 2102212464
        %v358 = vsel %vm354, %v342, %v357
        %v359 = vsel %vm353, %v356, %v358
        %v360 = vsel %vm352, %v339, %v342
        %v361 = vsel %vm355, %v348, 920167782
        %v362 = vsel %vm354, %v345, %v361
        %v363 = vsel %vm353, %v360, %v362
        %v364 = vsel %vm352, %v342, %v345
        %v365 = vsel %vm355, %v351, 1326507024
        %v366 = vsel %vm354, %v348, %v365
        %v367 = vsel %vm353, %v364, %v366
        %v368 = vshll.u32 %v328, 8
        %v369 = vmul.u32.u64.compose %v368, %v367
        %v370 = vextract.low.u32 %v369
        %v371 = vextract.high.u32 %v369
        %v372 = vmul.u32.u64.compose %v368, %v363
        %v373 = vextract.low.u32 %v372
        %v374 = vextract.high.u32 %v372
        %v375 = vmul.u32 %v368, %v359
        %v376 = vadd.s32 %v371, %v373
        %vm377 = vc.u32 %v371, %v373
        %v378 = vadd.s32 %v374, 1
        %v379 = vsel %vm377, %v378, %v374
        %v380 = vadd.s32 %v375, %v379
        %v381 = vadd.s32 %v380, 536870912
        %v382 = vshrl.u32 %v381, 30
        %v383 = vshll.u32 %v382, 30
        %v384 = vsub.s32 %v380, %v383
        %vm385 = vcmp.lt.s32.totalorder %v384, 0
        %v386 = vsub.s32 0, %v384
        %v387 = vsel %vm385, %v386, %v384
        %v388 = vclz %v387
        %v389 = vsub.s32 %v388, 2
        %vm390 = vcmp.gt.s32.totalorder 0, %v389
        %v391 = vsel %vm390, 0, %v389
        %v392 = vsub.s32 32, %v391
        %v393 = vshll.u32 %v384, %v391
        %v394 = vshrl.u32 %v376, %v392
        %v395 = vor.u32 %v393, %v394
        %v396 = vsub.s32 4294967266, %v391
        %v397 = vadd.s32 %v396, 127
        %v398 = vshll.u32 %v397, 23
        %v399 = vor.u32 4788187, %v398
        %v400 = vand.u32 2147483647, %v399
        %v402 = vcvt.s32.f32 %v395
        %v403 = vmul.f32 %v402, %v400
        %v404 = vxor.u32 %v403, 2147483648
        %v405 = vsel %vm322, %v404, %v403
        %v406 = vsub.s32 4, %v382
        %v407 = vsel %vm322, %v406, %v382
        %v408 = vsel %vm321, %v213, %v405
        %v409 = vsel %vm321, 0, %v407
        %v410 = vcosq.f32.pop %v408
        %v411 = vsinq.f32.pop %v408
        %vm412 = vweird.f32 %v213
        %v413 = vadd.s32 %v409, 3
        %v414 = vand.u32 %v413, 3
        %vm415 = vcmp.lt.s32.totalorder %v414, 2
        %vm416 = vcmp.eq.s32.totalorder %v414, 0
        %v417 = vxor.u32 %v411, 2147483648
        %v418 = vsel %vm416, %v410, %v417
        %vm419 = vcmp.eq.s32.totalorder %v414, 2
        %v420 = vxor.u32 %v410, 2147483648
        %v421 = vsel %vm419, %v420, %v411
        %v422 = vsel %vm415, %v418, %v421
        %v423 = vsel %vm412, nan, %v422
        %v424 = vand.u32 2147483647, %v214
        %vm425 = vcmp.le.f32.partialorder %v424, 0.7853982
        %vm426 = vcmp.lt.s32.totalorder %v214, 0
        %v427 = vand.u32 %v214, 2139095040
        %v428 = vshrl.u32 %v427, 23
        %v429 = vsub.s32 %v428, 127
        %v430 = vand.u32 2147483647, %v214
        %v431 = vand.u32 %v430, 8388607
        %v432 = vor.u32 %v431, 8388608
        %v433 = vsub.s32 0, %v432
        %v434 = vadd.s32 %v429, 1
        %vm435 = vcmp.gt.s32.totalorder %v434, 0
        %v436 = vsel %vm435, %v434, 0
        %v437 = vshrl.u32 %v436, 5
        %v438 = vand.u32 %v436, 31
        %v439 = vsub.s32 32, %v438
        %v440 = vshrl.u32 683565275, %v439
        %v441 = vshll.u32 683565275, %v438
        %v442 = vshrl.u32 2475754826, %v439
        %v443 = vor.u32 %v441, %v442
        %v444 = vshll.u32 2475754826, %v438
        %v445 = vshrl.u32 2131351028, %v439
        %v446 = vor.u32 %v444, %v445
        %v447 = vshll.u32 2131351028, %v438
        %v448 = vshrl.u32 2102212464, %v439
        %v449 = vor.u32 %v447, %v448
        %v450 = vshll.u32 2102212464, %v438
        %v451 = vshrl.u32 920167782, %v439
        %v452 = vor.u32 %v450, %v451
        %v453 = vshll.u32 920167782, %v438
        %v454 = vshrl.u32 1326507024, %v439
        %v455 = vor.u32 %v453, %v454
        %vm456 = vcmp.lt.s32.totalorder %v437, 1
        %vm457 = vcmp.lt.s32.totalorder %v437, 2
        %vm458 = vcmp.lt.s32.totalorder %v437, 3
        %vm459 = vcmp.lt.s32.totalorder %v437, 4
        %v460 = vsel %vm456, %v440, %v443
        %v461 = vsel %vm459, %v449, 2102212464
        %v462 = vsel %vm458, %v446, %v461
        %v463 = vsel %vm457, %v460, %v462
        %v464 = vsel %vm456, %v443, %v446
        %v465 = vsel %vm459, %v452, 920167782
        %v466 = vsel %vm458, %v449, %v465
        %v467 = vsel %vm457, %v464, %v466
        %v468 = vsel %vm456, %v446, %v449
        %v469 = vsel %vm459, %v455, 1326507024
        %v470 = vsel %vm458, %v452, %v469
        %v471 = vsel %vm457, %v468, %v470
        %v472 = vshll.u32 %v432, 8
        %v473 = vmul.u32.u64.compose %v472, %v471
        %v474 = vextract.low.u32 %v473
        %v475 = vextract.high.u32 %v473
        %v476 = vmul.u32.u64.compose %v472, %v467
        %v477 = vextract.low.u32 %v476
        %v478 = vextract.high.u32 %v476
        %v479 = vmul.u32 %v472, %v463
        %v480 = vadd.s32 %v475, %v477
        %vm481 = vc.u32 %v475, %v477
        %v482 = vadd.s32 %v478, 1
        %v483 = vsel %vm481, %v482, %v478
        %v484 = vadd.s32 %v479, %v483
        %v485 = vadd.s32 %v484, 536870912
        %v486 = vshrl.u32 %v485, 30
        %v487 = vshll.u32 %v486, 30
        %v488 = vsub.s32 %v484, %v487
        %vm489 = vcmp.lt.s32.totalorder %v488, 0
        %v490 = vsub.s32 0, %v488
        %v491 = vsel %vm489, %v490, %v488
        %v492 = vclz %v491
        %v493 = vsub.s32 %v492, 2
        %vm494 = vcmp.gt.s32.totalorder 0, %v493
        %v495 = vsel %vm494, 0, %v493
        %v496 = vsub.s32 32, %v495
        %v497 = vshll.u32 %v488, %v495
        %v498 = vshrl.u32 %v480, %v496
        %v499 = vor.u32 %v497, %v498
        %v500 = vsub.s32 4294967266, %v495
        %v501 = vadd.s32 %v500, 127
        %v502 = vshll.u32 %v501, 23
        %v503 = vor.u32 4788187, %v502
        %v504 = vand.u32 2147483647, %v503
        %v506 = vcvt.s32.f32 %v499
        %v507 = vmul.f32 %v506, %v504
        %v508 = vxor.u32 %v507, 2147483648
        %v509 = vsel %vm426, %v508, %v507
        %v510 = vsub.s32 4, %v486
        %v511 = vsel %vm426, %v510, %v486
        %v512 = vsel %vm425, %v214, %v509
        %v513 = vsel %vm425, 0, %v511
        %v514 = vcosq.f32.pop %v512
        %v515 = vsinq.f32.pop %v512
        %vm516 = vweird.f32 %v214
        %v517 = vadd.s32 %v513, 3
        %v518 = vand.u32 %v517, 3
        %vm519 = vcmp.lt.s32.totalorder %v518, 2
        %vm520 = vcmp.eq.s32.totalorder %v518, 0
        %v521 = vxor.u32 %v515, 2147483648
        %v522 = vsel %vm520, %v514, %v521
        %vm523 = vcmp.eq.s32.totalorder %v518, 2
        %v524 = vxor.u32 %v514, 2147483648
        %v525 = vsel %vm523, %v524, %v515
        %v526 = vsel %vm519, %v522, %v525
        %v527 = vsel %vm516, nan, %v526
        %v528 = vand.u32 2147483647, %v215
        %vm529 = vcmp.le.f32.partialorder %v528, 0.7853982
        %vm530 = vcmp.lt.s32.totalorder %v215, 0
        %v531 = vand.u32 %v215, 2139095040
        %v532 = vshrl.u32 %v531, 23
        %v533 = vsub.s32 %v532, 127
        %v534 = vand.u32 2147483647, %v215
        %v535 = vand.u32 %v534, 8388607
        %v536 = vor.u32 %v535, 8388608
        %v537 = vsub.s32 0, %v536
        %v538 = vadd.s32 %v533, 1
        %vm539 = vcmp.gt.s32.totalorder %v538, 0
        %v540 = vsel %vm539, %v538, 0
        %v541 = vshrl.u32 %v540, 5
        %v542 = vand.u32 %v540, 31
        %v543 = vsub.s32 32, %v542
        %v544 = vshrl.u32 683565275, %v543
        %v545 = vshll.u32 683565275, %v542
        %v546 = vshrl.u32 2475754826, %v543
        %v547 = vor.u32 %v545, %v546
        %v548 = vshll.u32 2475754826, %v542
        %v549 = vshrl.u32 2131351028, %v543
        %v550 = vor.u32 %v548, %v549
        %v551 = vshll.u32 2131351028, %v542
        %v552 = vshrl.u32 2102212464, %v543
        %v553 = vor.u32 %v551, %v552
        %v554 = vshll.u32 2102212464, %v542
        %v555 = vshrl.u32 920167782, %v543
        %v556 = vor.u32 %v554, %v555
        %v557 = vshll.u32 920167782, %v542
        %v558 = vshrl.u32 1326507024, %v543
        %v559 = vor.u32 %v557, %v558
        %vm560 = vcmp.lt.s32.totalorder %v541, 1
        %vm561 = vcmp.lt.s32.totalorder %v541, 2
        %vm562 = vcmp.lt.s32.totalorder %v541, 3
        %vm563 = vcmp.lt.s32.totalorder %v541, 4
        %v564 = vsel %vm560, %v544, %v547
        %v565 = vsel %vm563, %v553, 2102212464
        %v566 = vsel %vm562, %v550, %v565
        %v567 = vsel %vm561, %v564, %v566
        %v568 = vsel %vm560, %v547, %v550
        %v569 = vsel %vm563, %v556, 920167782
        %v570 = vsel %vm562, %v553, %v569
        %v571 = vsel %vm561, %v568, %v570
        %v572 = vsel %vm560, %v550, %v553
        %v573 = vsel %vm563, %v559, 1326507024
        %v574 = vsel %vm562, %v556, %v573
        %v575 = vsel %vm561, %v572, %v574
        %v576 = vshll.u32 %v536, 8
        %v577 = vmul.u32.u64.compose %v576, %v575
        %v578 = vextract.low.u32 %v577
        %v579 = vextract.high.u32 %v577
        %v580 = vmul.u32.u64.compose %v576, %v571
        %v581 = vextract.low.u32 %v580
        %v582 = vextract.high.u32 %v580
        %v583 = vmul.u32 %v576, %v567
        %v584 = vadd.s32 %v579, %v581
        %vm585 = vc.u32 %v579, %v581
        %v586 = vadd.s32 %v582, 1
        %v587 = vsel %vm585, %v586, %v582
        %v588 = vadd.s32 %v583, %v587
        %v589 = vadd.s32 %v588, 536870912
        %v590 = vshrl.u32 %v589, 30
        %v591 = vshll.u32 %v590, 30
        %v592 = vsub.s32 %v588, %v591
        %vm593 = vcmp.lt.s32.totalorder %v592, 0
        %v594 = vsub.s32 0, %v592
        %v595 = vsel %vm593, %v594, %v592
        %v596 = vclz %v595
        %v597 = vsub.s32 %v596, 2
        %vm598 = vcmp.gt.s32.totalorder 0, %v597
        %v599 = vsel %vm598, 0, %v597
        %v600 = vsub.s32 32, %v599
        %v601 = vshll.u32 %v592, %v599
        %v602 = vshrl.u32 %v584, %v600
        %v603 = vor.u32 %v601, %v602
        %v604 = vsub.s32 4294967266, %v599
        %v605 = vadd.s32 %v604, 127
        %v606 = vshll.u32 %v605, 23
        %v607 = vor.u32 4788187, %v606
        %v608 = vand.u32 2147483647, %v607
        %v610 = vcvt.s32.f32 %v603
        %v611 = vmul.f32 %v610, %v608
        %v612 = vxor.u32 %v611, 2147483648
        %v613 = vsel %vm530, %v612, %v611
        %v614 = vsub.s32 4, %v590
        %v615 = vsel %vm530, %v614, %v590
        %v616 = vsel %vm529, %v215, %v613
        %v617 = vsel %vm529, 0, %v615
        %v618 = vcosq.f32.pop %v616
        %v619 = vsinq.f32.pop %v616
        %vm620 = vweird.f32 %v215
        %v621 = vadd.s32 %v617, 3
        %v622 = vand.u32 %v621, 3
        %vm623 = vcmp.lt.s32.totalorder %v622, 2
        %vm624 = vcmp.eq.s32.totalorder %v622, 0
        %v625 = vxor.u32 %v619, 2147483648
        %v626 = vsel %vm624, %v618, %v625
        %vm627 = vcmp.eq.s32.totalorder %v622, 2
        %v628 = vxor.u32 %v618, 2147483648
        %v629 = vsel %vm627, %v628, %v619
        %v630 = vsel %vm623, %v626, %v629
        %v631 = vsel %vm620, nan, %v630
        %632 = vst [vmem:[%s137] sm:$0xff] %v319
        %633 = vst [vmem:[%s137 + $0x8] sm:$0xff] %v423
        %634 = vst [vmem:[%s137 + $0x10] sm:$0xff] %v527
        %635 = vst [vmem:[%s137 + $0x18] sm:$0xff] %v631
        %s636 = sand.u32 %s71, 1
        %s637 = scalar_lea.sflag [#allocation3], %s636
        %s638 = sand.u32 %s71, 1
        %s639 = smul.addr %s638, 32
        %s640 = scalar_lea.vmem [#allocation2], %s639
        // Predicated region
        $region29: #{tpu_custom_call.1} parent=27 // pred_check
          %p641 = pneg %p81
        $region30: #{tpu_custom_call.1} parent=27 // pred_check_branch
          %643 = sbr.rel (%p641) target = $region32
        $region31: #{tpu_custom_call.1} parent=27 // pred_region
          %s644 = smul.u32 4, %s16
          %s646 = ssub.s32 512, 512
          %647 = vsyncadd %s637, %s646
          %s648 = smul.addr %s644, 128
          %s649 = scalar_lea.hbm %s2, %s648
          %s650 = sshll.u32 %s640, 4
          %s651 = int_to_ptr.vmem [resolvable:$true] %s650
          %656 = dma.vmem_to_hbm [thread:$0]  %s651, 512, %s649, %s637, 128, 128, 8
        $region32: #{tpu_custom_call.1} parent=27 // pred_fallthru
          _
      $region28: #{tpu_custom_call.1} parent=5 // pred_fallthru
        _
      %p657 = scmp.le.s32.totalorder 2, %s11
      // Predicated region
      $region33: #{tpu_custom_call.1} parent=5 // pred_check
        %p658 = pneg %p657
      $region34: #{tpu_custom_call.1} parent=5 // pred_check_branch
        %660 = sbr.rel (%p658) target = $region36
      $region35: #{tpu_custom_call.1} parent=5 // pred_region
        %s661 = ssub.s32 %s11, 2
        // Predicated region
        $region37: #{tpu_custom_call.1} parent=35 // pred_check
          %p662 = pneg %p87
        $region38: #{tpu_custom_call.1} parent=35 // pred_check_branch
          %664 = sbr.rel (%p662) target = $region40
        $region39: #{tpu_custom_call.1} parent=35 // pred_region
          %s665 = sand.u32 %s72, 1
          %s666 = scalar_lea.sflag [#allocation3], %s665
          %s667 = sand.u32 %s72, 1
          %s668 = smul.addr %s667, 32
          %s669 = scalar_lea.vmem [#allocation2], %s668
          %670 = dma.done %s666, 512
        $region40: #{tpu_custom_call.1} parent=35 // pred_fallthru
          _
      $region36: #{tpu_custom_call.1} parent=5 // pred_fallthru
        _
    $region6: #{tpu_custom_call.1} parent=1 // loop_footer
      %s15 = sadd.s32 1, %s11
    $region7: #{tpu_custom_call.1} parent=1 // loop_footer_branch
      %10 = sbr.rel target = $region3
    $region8: #{tpu_custom_call.1} parent=1 // loop_exit
      _
    %671 = vsyncpa [#allocation3], 1
    %s672 = scalar_lea.sflag [#allocation3], 1
    %673 = vsyncpa %s672, 1

</llo_original>
